<compile_context>
chip_gen: v7x
topology: tpu7x:2x2x1
jax: 0.10.0
libtpu: 0.0.40
codegen_flags: <defaults>
</compile_context>

<pallas_src>
import jax
import jax.numpy as jnp
from jax.experimental import pallas as pl
from jax.experimental.pallas import tpu as pltpu
from typing import NamedTuple


def _round_up(v, m):
    return ((v + m - 1) // m) * m


def _cdiv(a, b):
    return (a + b - 1) // b


def _sublane_multiple(itemsize):
    # Sub-32-bit dtypes pack along sublanes: 8 rows (f32), 16 (bf16), 32 (int8).
    return {4: 8, 2: 16, 1: 32}.get(itemsize, 8)


_SMALL_FOOTPRINT_BYTES = 2 << 20  # everything fits a single VMEM block easily


class LinearParams(NamedTuple):
    w_t: jax.Array      # (K, N) for the small path; (Kp, Np) padded for tiled
    b2d: jax.Array      # (1, N) or (1, Np)
    in_dim: int
    out_dim: int
    small: bool
    tn: int
    tk: int


def prepare_linear_params(weight, bias, *, max_batch=128, compute_dtype=None):
    """One-time parameter preparation (hoisted out of the per-forward path).

    weight: (out_dim, in_dim) PyTorch layout; bias: (out_dim,).
    Transposes the weight once to (in_dim, out_dim) and, for the tiled path,
    pads it to tile multiples exactly once. `compute_dtype=jnp.bfloat16` can be
    used on v6e/v7x to halve weight HBM bytes (accumulation stays f32).
    """
    out_dim, in_dim = weight.shape
    assert bias.shape == (out_dim,)
    if compute_dtype is not None:
        weight = weight.astype(compute_dtype)
    w_t = weight.T                      # one-time HBM transpose, (K, N)
    b2d = bias.reshape(1, out_dim)      # bias kept in f32 for the f32 add

    item = jnp.dtype(w_t.dtype).itemsize
    footprint = (max_batch * in_dim + in_dim * out_dim
                 + out_dim + max_batch * out_dim) * max(item, 4)
    if footprint <= _SMALL_FOOTPRINT_BYTES:
        # Tiny problem: no padding, single-block kernel at call time.
        return LinearParams(w_t, b2d, in_dim, out_dim, True, out_dim, in_dim)

    # Tiled path: lane-dense, MXU-friendly tiles, largest that keep the
    # double-buffered pipeline comfortably inside VMEM (v7x: 64 MiB / TC).
    tn = min(_round_up(out_dim, 128), 512)
    tk = min(_round_up(in_dim, 128), 1024)
    # v7x has 2 TensorCores: make sure the parallel grid has >= 2 iterations.
    sub = _sublane_multiple(item)
    tm_est = min(_round_up(max_batch, sub), 512)
    if _cdiv(max_batch, tm_est) * _cdiv(_round_up(out_dim, 128), tn) < 2 and tn > 128:
        tn = max(128, tn // 2)

    Np, Kp = _round_up(out_dim, tn), _round_up(in_dim, tk)
    if (Kp, Np) != (in_dim, out_dim):
        w_t = jnp.pad(w_t, ((0, Kp - in_dim), (0, Np - out_dim)))
    if Np != out_dim:
        b2d = jnp.pad(b2d, ((0, 0), (0, Np - out_dim)))
    return LinearParams(w_t, b2d, in_dim, out_dim, False, tn, tk)


# --------------------------------------------------------------------------
# Kernels
# --------------------------------------------------------------------------
def _small_linear_kernel(x_ref, w_ref, b_ref, o_ref):
    # Whole problem in one VMEM block: one MXU dot + bias add.
    o_ref[...] = (
        jnp.dot(x_ref[...], w_ref[...], preferred_element_type=jnp.float32)
        + b_ref[...].astype(jnp.float32)
    ).astype(o_ref.dtype)


def _linear_kernel_f32_out(x_ref, w_ref, b_ref, o_ref):
    # Output dtype is f32: accumulate directly into the resident output block
    # (no scratch, no final tm*tn copy). Bias seeded exactly once at k == 0.
    k = pl.program_id(2)

    @pl.when(k == 0)
    def _():
        o_ref[...] = jnp.broadcast_to(b_ref[...], o_ref.shape)

    o_ref[...] += jnp.dot(x_ref[...], w_ref[...],
                          preferred_element_type=jnp.float32)


def _linear_kernel_acc(x_ref, w_ref, b_ref, o_ref, acc_ref):
    # General path: f32 VMEM accumulator, downcast + bias in the finalize branch.
    k = pl.program_id(2)

    @pl.when(k == 0)
    def _():
        acc_ref[...] = jnp.zeros_like(acc_ref)

    acc_ref[...] += jnp.dot(x_ref[...], w_ref[...],
                            preferred_element_type=jnp.float32)

    @pl.when(k == pl.num_programs(2) - 1)
    def _():
        o_ref[...] = (acc_ref[...] + b_ref[...].astype(jnp.float32)).astype(o_ref.dtype)


# --------------------------------------------------------------------------
# Forward
# --------------------------------------------------------------------------
def linear_forward(x, params: LinearParams, *, out_dtype=None):
    """x: (B, in_dim) -> (B, out_dim), matching nn.Linear forward."""
    B, in_dim = x.shape
    assert in_dim == params.in_dim
    out_dtype = jnp.dtype(out_dtype or x.dtype)
    N = params.out_dim

    if params.small:
        # Single-block, no-padding fast path (whole arrays in VMEM).
        return pl.pallas_call(
            _small_linear_kernel,
            out_shape=jax.ShapeDtypeStruct((B, N), out_dtype),
        )(x, params.w_t, params.b2d)

    Kp, Np = params.w_t.shape
    tn, tk = params.tn, params.tk
    x_item = jnp.dtype(x.dtype).itemsize
    w_item = params.w_t.dtype.itemsize
    out_item = out_dtype.itemsize

    # tm covers the full batch for small-batch inference -> W streamed once.
    sub = _sublane_multiple(x_item)
    tm = min(_round_up(B, sub), 512)
    Mp = _round_up(B, tm)

    if (Mp, Kp) != (B, in_dim):
        x = jnp.pad(x, ((0, Mp - B), (0, Kp - in_dim)))

    gm, gn, gk = Mp // tm, Np // tn, Kp // tk
    f32_out = out_dtype == jnp.dtype(jnp.float32)

    # Honest cost estimate: x re-streamed gn times, W re-streamed gm times.
    cost = pl.CostEstimate(
        flops=2 * Mp * Np * Kp,
        transcendentals=0,
        bytes_accessed=(Mp * Kp * x_item * gn
                        + Kp * Np * w_item * gm
                        + Np * params.b2d.dtype.itemsize
                        + Mp * Np * out_item),
    )

    # Double-buffered VMEM footprint; raise the scoped limit to cover it
    # (v5e default is only ~16 MiB) while leaving headroom on v7x's 64 MiB.
    vmem_est = (2 * (tm * tk * x_item + tk * tn * w_item)
                + 2 * tm * tn * out_item
                + (0 if f32_out else tm * tn * 4)
                + 2 * tn * params.b2d.dtype.itemsize)
    vmem_limit = min(max(32 << 20, int(1.5 * vmem_est)), 56 << 20)

    kernel = _linear_kernel_f32_out if f32_out else _linear_kernel_acc
    scratch = [] if f32_out else [pltpu.VMEM((tm, tn), jnp.float32)]

    out_p = pl.pallas_call(
        kernel,
        out_shape=jax.ShapeDtypeStruct((Mp, Np), out_dtype),
        grid_spec=pltpu.PrefetchScalarGridSpec(
            num_scalar_prefetch=0,
            grid=(gm, gn, gk),
            in_specs=[
                pl.BlockSpec((tm, tk), lambda i, j, k: (i, k)),   # x
                pl.BlockSpec((tk, tn), lambda i, j, k: (k, j)),   # W^T, (K, N)
                pl.BlockSpec((1, tn), lambda i, j, k: (0, j)),    # bias
            ],
            out_specs=pl.BlockSpec((tm, tn), lambda i, j, k: (i, j)),
            scratch_shapes=scratch,
        ),
        compiler_params=pltpu.CompilerParams(
            dimension_semantics=("parallel", "parallel", "arbitrary"),
            vmem_limit_bytes=vmem_limit,
        ),
        cost_estimate=cost,
    )(x, params.w_t, params.b2d)

    if (Mp, Np) != (B, N):
        out_p = out_p[:B, :N]
    return out_p


if __name__ == "__main__":
    key = jax.random.PRNGKey(0)

    # ---- Demo shapes consistent with the module: batch=8, in=32, out=16 ----
    batch, input_dim, output_dim = 8, 32, 16
    kx, kw, kb = jax.random.split(key, 3)
    x = jax.random.normal(kx, (batch, input_dim), dtype=jnp.float32)
    bound = 1.0 / (input_dim ** 0.5)  # nn.Linear's uniform(-1/sqrt(in), 1/sqrt(in))
    weight = jax.random.uniform(kw, (output_dim, input_dim), jnp.float32, -bound, bound)
    bias = jax.random.uniform(kb, (output_dim,), jnp.float32, -bound, bound)

    params = prepare_linear_params(weight, bias, max_batch=batch)
    out = linear_forward(x, params)
    jax.block_until_ready(out)
    ref = x @ weight.T + bias
    assert out.shape == (batch, output_dim)
    assert jnp.allclose(out, ref, atol=1e-5, rtol=1e-5)

    # ---- Sanity-check the tiled path as well (moderate shapes) ----
    b2, k2, n2 = 256, 1024, 512
    kx2, kw2, kb2 = jax.random.split(jax.random.PRNGKey(1), 3)
    x2 = jax.random.normal(kx2, (b2, k2), dtype=jnp.float32)
    w2 = jax.random.normal(kw2, (n2, k2), dtype=jnp.float32) * 0.02
    bb2 = jax.random.normal(kb2, (n2,), dtype=jnp.float32)
    params2 = prepare_linear_params(w2, bb2, max_batch=b2)
    assert not params2.small
    out2 = linear_forward(x2, params2)
    jax.block_until_ready(out2)
    ref2 = x2 @ w2.T + bb2
    assert jnp.allclose(out2, ref2, atol=1e-3, rtol=1e-3)

    print("KERNEL_OK")
</pallas_src>

<mosaic_0001>
module attributes {stable_mosaic.version = 11 : i64} {
  func.func @_small_linear_kernel(%arg0: memref<8x32xf32, #tpu.memory_space<vmem>>, %arg1: memref<32x16xf32, #tpu.memory_space<vmem>>, %arg2: memref<1x16xf32, #tpu.memory_space<vmem>>, %arg3: memref<8x16xf32, #tpu.memory_space<vmem>>) attributes {dimension_semantics = [], scalar_prefetch = 0 : i64, scratch_operands = 0 : i64, tpu.core_type = #tpu.core_type<tc>} {
    %c0 = arith.constant 0 : index
    %c0_0 = arith.constant 0 : index
    %0 = vector.load %arg0[%c0, %c0_0] : memref<8x32xf32, #tpu.memory_space<vmem>>, vector<8x32xf32>
    %c0_1 = arith.constant 0 : index
    %c0_2 = arith.constant 0 : index
    %1 = vector.load %arg1[%c0_1, %c0_2] : memref<32x16xf32, #tpu.memory_space<vmem>>, vector<32x16xf32>
    %cst = arith.constant dense<0.000000e+00> : vector<8x16xf32>
    %2 = tpu.matmul %0, %1, %cst {dimension_numbers = #tpu.dot_dimension_numbers<[1], [0], [0], [1], [0, 0, 1, 1], [], []>} : vector<8x32xf32>, vector<32x16xf32>, vector<8x16xf32> -> vector<8x16xf32>
    %c0_3 = arith.constant 0 : index
    %c0_4 = arith.constant 0 : index
    %3 = vector.load %arg2[%c0_3, %c0_4] : memref<1x16xf32, #tpu.memory_space<vmem>>, vector<1x16xf32>
    %4 = vector.broadcast %3 : vector<1x16xf32> to vector<8x16xf32>
    %5 = arith.addf %2, %4 : vector<8x16xf32>
    %c0_5 = arith.constant 0 : index
    %c0_6 = arith.constant 0 : index
    %6 = vector.load %arg3[%c0_5, %c0_6] : memref<8x16xf32, #tpu.memory_space<vmem>>, vector<8x16xf32>
    tpu.vector_store %arg3[%c0_5, %c0_6], %5 {strides = array<i32>} : memref<8x16xf32, #tpu.memory_space<vmem>>, vector<8x16xf32>,
    return
  }
}

</mosaic_0001>

<llo_original>
// kernel: tpu_custom_call.1
$region0: #{tpu_custom_call.1}
  #allocation0 [shape = 'u32[]', space=smem, size = 0x4, offset = 0x4, fixed_abs, tag = 'smem constant byte address 0x4 - core index']
  #allocation1 [shape = 'u32[144,128]{1,0:T(1,128)}', space=vmem, size = 0x12000, scoped, tag = 'internal scratch']
  %s0 = inlined_call_operand.vmem [shape: f32[8,32], index: 0, kind: input, shape index: {}]
  %s1 = inlined_call_operand.vmem [shape: f32[32,16], index: 1, kind: input, shape index: {}]
  %s2 = inlined_call_operand.vmem [shape: f32[1,16], index: 2, kind: input, shape index: {}]
  %s3 = inlined_call_operand.hbm [shape: f32[8,16], index: 3, kind: output, shape index: {}]
  %s4 = sld [smem:[#allocation0]]
  $region22: #{tpu_custom_call.1} parent=0
    _
  %s6 = ssub.s32 1, %s4
  %s7 = scalar_select 0, %s6, %s4
  $region1: #{tpu_custom_call.1} parent=0
    #allocation2 [shape = 'u8[4096]{0}', space=vmem, size = 0x1000, scoped, tag = 'output window, operand 0, single buffered']
    #allocation3 [shape = 's32[1]{0}', space=sflag, size = 0x4, scoped, tag = 'scoped memory for tpu_custom_call.1']
    %8 = vsyncpa [#allocation3], 0
    // Predicated region
    $region2: #{tpu_custom_call.1} parent=1 // pred_check
      _
    $region3: #{tpu_custom_call.1} parent=1 // pred_check_branch
      %10 = sbr.rel (0) target = $region5
    $region4: #{tpu_custom_call.1} parent=1 // pred_region
      _
    $region5: #{tpu_custom_call.1} parent=1 // pred_fallthru
      _
    // Predicated region
    $region6: #{tpu_custom_call.1} parent=1 // pred_check
      _
    $region7: #{tpu_custom_call.1} parent=1 // pred_check_branch
      %12 = sbr.rel (0) target = $region9
    $region8: #{tpu_custom_call.1} parent=1 // pred_region
      _
    $region9: #{tpu_custom_call.1} parent=1 // pred_fallthru
      _
    // Predicated region
    $region10: #{tpu_custom_call.1} parent=1 // pred_check
      _
    $region11: #{tpu_custom_call.1} parent=1 // pred_check_branch
      %14 = sbr.rel (0) target = $region13
    $region12: #{tpu_custom_call.1} parent=1 // pred_region
      _
    $region13: #{tpu_custom_call.1} parent=1 // pred_fallthru
      _
    %v15 = vld [vmem:[%s0] sm:$0xff]
    %v16 = vld [vmem:[%s1] sm:$0xff]
    %v17 = vld [vmem:[%s1 + $0x8] sm:$0xff]
    %v18 = vld [vmem:[%s1 + $0x10] sm:$0xff]
    %v19 = vld [vmem:[%s1 + $0x18] sm:$0xff]
    %v20 = vld [vmem:[%s2] sm:$0x1]
    %v22 = vlaneseq
    %v23 = vshrl.u32 %v22, 7
    %v24 = vsub.s32 0, %v23
    %v25 = vrot.slane %v20, %v24
    %vm27 = vcmask 261120
    %v29 = vsel %vm27, %v15, 0
    %31 = vmatprep.subr.mxu0 0.0
    %32 = vmatpush1.msra.mxu0 %v16
    %33 = vmatprep.subr.mxu0 0.0
    %34 = vmatpush1.msra.mxu0 %v17
    %35 = vmatprep.subr.mxu0 0.0
    %36 = vmatpush1.msra.mxu0 %v18
    %37 = vmatprep.subr.mxu0 0.0
    %38 = vmatpush1.msra.mxu0 %v19
    %39 = vmatprep.subr.mxu0 0.0
    %40 = vmatpush1.msra.mxu0 0.0
    %41 = vmatprep.subr.mxu0 0.0
    %42 = vmatpush1.msra.mxu0 0.0
    %43 = vmatprep.subr.mxu0 0.0
    %44 = vmatpush1.msra.mxu0 0.0
    %45 = vmatprep.subr.mxu0 0.0
    %46 = vmatpush1.msra.mxu0 0.0
    %47 = vmatprep.subr.mxu0 0.0
    %48 = vmatpush1.msra.mxu0 0.0
    %49 = vmatprep.subr.mxu0 0.0
    %50 = vmatpush1.msra.mxu0 0.0
    %51 = vmatprep.subr.mxu0 0.0
    %52 = vmatpush1.msra.mxu0 0.0
    %53 = vmatprep.subr.mxu0 0.0
    %54 = vmatpush1.msra.mxu0 0.0
    %55 = vmatprep.subr.mxu0 0.0
    %56 = vmatpush1.msra.mxu0 0.0
    %57 = vmatprep.subr.mxu0 0.0
    %58 = vmatpush1.msra.mxu0 0.0
    %59 = vmatprep.subr.mxu0 0.0
    %60 = vmatpush1.msra.mxu0 0.0
    %61 = vmatprep.subr.mxu0 0.0
    %62 = vmatpush1.msra.mxu0 0.0
    %63 = vmatprep.subr.mxu0 0.0
    %64 = vmatpush1.msra.mxu0 0.0
    %65 = vmatprep.subr.mxu0 0.0
    %66 = vmatpush1.msra.mxu0 0.0
    %67 = vmatprep.subr.mxu0 0.0
    %68 = vmatpush1.msra.mxu0 0.0
    %69 = vmatprep.subr.mxu0 0.0
    %70 = vmatpush1.msra.mxu0 0.0
    %71 = vmatprep.subr.mxu0 0.0
    %72 = vmatpush1.msra.mxu0 0.0
    %73 = vmatprep.subr.mxu0 0.0
    %74 = vmatpush1.msra.mxu0 0.0
    %75 = vmatprep.subr.mxu0 0.0
    %76 = vmatpush1.msra.mxu0 0.0
    %77 = vmatprep.subr.mxu0 0.0
    %78 = vmatpush1.msra.mxu0 0.0
    %79 = vmatprep.subr.mxu0 0.0
    %80 = vmatpush1.msra.mxu0 0.0
    %81 = vmatprep.subr.mxu0 0.0
    %82 = vmatpush1.msra.mxu0 0.0
    %83 = vmatprep.subr.mxu0 0.0
    %84 = vmatpush1.msra.mxu0 0.0
    %85 = vmatprep.subr.mxu0 0.0
    %86 = vmatpush1.msra.mxu0 0.0
    %87 = vmatprep.subr.mxu0 0.0
    %88 = vmatpush1.msra.mxu0 0.0
    %89 = vmatprep.subr.mxu0 0.0
    %90 = vmatpush1.msra.mxu0 0.0
    %91 = vmatprep.subr.mxu0 0.0
    %92 = vmatpush1.msra.mxu0 0.0
    %93 = vmatprep.subr.mxu0 0.0
    %94 = vmatpush1.msra.mxu0 0.0
    %95 = vmatprep.mubr.f32.mxu0 0.0
    %96 = vmatmul.mubr.f32.gmra.mrb[0].mxu0 %v29
    %v97 = vpop.f32.mrb[0].mxu0
    %v98 = vadd.f32 %v25, %v97
    %v99 = vpop.f32.mrb[0].mxu0
    %100 = vdwg.mxu0
    %vm101 = vcmask 130048
    %102 = vst.msk [vmem:[#allocation2] sm:$0xff] %vm101, %v98
    // Predicated region
    $region14: #{tpu_custom_call.1} parent=1 // pred_check
      _
    $region15: #{tpu_custom_call.1} parent=1 // pred_check_branch
      %104 = sbr.rel (0) target = $region17
    $region16: #{tpu_custom_call.1} parent=1 // pred_region
      %s106 = ssub.s32 128, 128
      %107 = vsyncadd [#allocation3], %s106
      %s109 = sshll.u32 [#allocation2], 4
      %s110 = int_to_ptr.vmem [resolvable:$true] %s109
      %112 = dma.vmem_to_hbm [thread:$0]  %s110, 128, %s3, [#allocation3]
    $region17: #{tpu_custom_call.1} parent=1 // pred_fallthru
      _
    // Predicated region
    $region18: #{tpu_custom_call.1} parent=1 // pred_check
      _
    $region19: #{tpu_custom_call.1} parent=1 // pred_check_branch
      %114 = sbr.rel (0) target = $region21
    $region20: #{tpu_custom_call.1} parent=1 // pred_region
      %115 = dma.done [#allocation3], 128
    $region21: #{tpu_custom_call.1} parent=1 // pred_fallthru
      _
    %116 = vsyncpa [#allocation3], 1

</llo_original>
